<compile_context>
chip_gen: v5e
topology: v5e:2x2
jax: 0.10.0
libtpu: 0.0.40
codegen_flags: <defaults>
</compile_context>

<pallas_src>
import functools

import numpy as np

import jax
import jax.numpy as jnp
from jax import lax
from jax.experimental import pallas as pl
from jax.experimental.pallas import tpu as pltpu


def _build_border_masks(H, W, K):
    """(K*K, H*W) float32 0/1 masks.

    mask[t, h*W + w] == 1 iff tap t = (dy, dx) of a KxK 'same' convolution reads
    an in-bounds input pixel when producing output position (h, w).
    """
    P = K // 2
    hh, ww = np.meshgrid(np.arange(H), np.arange(W), indexing="ij")
    rows = []
    for dy in range(K):
        for dx in range(K):
            sy, sx = dy - P, dx - P
            valid = ((hh + sy >= 0) & (hh + sy < H) &
                     (ww + sx >= 0) & (ww + sx < W))
            rows.append(valid.reshape(-1))
    return np.stack(rows).astype(np.float32)


def residual_block_kernel(x_ref, w1_ref, b1_ref, w2_ref, b2_ref, mask_ref,
                          o_ref, patches_ref, *, H, W, K, C, mxu_dtype):
    """One batch element per grid step; images kept flat as (C, H*W).

    x_ref      : (1, C, H*W)       input (also the residual), lane-dense
    w1_ref     : (C, K*K*C)        conv1 weights, im2col order, mxu dtype
    b1_ref     : (C, 1)            conv1 bias (f32)
    w2_ref     : (C, K*K*C)        conv2 weights
    b2_ref     : (C, 1)            conv2 bias
    mask_ref   : (K*K, H*W)        0/1 border masks (f32)
    o_ref      : (1, C, H*W)       output, lane-dense
    patches_ref: (K*K*C, H*W) f32  VMEM im2col scratch (reused by both convs)
    """
    P = K // 2
    HW = H * W
    taps = [(dy * K + dx, (dy - P) * W + (dx - P))
            for dy in range(K) for dx in range(K)]

    # Zero only the constant per-tap tail strips (each <= (W+1)*P lanes wide);
    # the bulk of the scratch is fully overwritten every conv, so there is no
    # full-buffer zero fill.  Shared by both convs within this grid step.
    for t, s in taps:
        r0 = t * C
        if s > 0:
            patches_ref[r0:r0 + C, HW - s:] = jnp.zeros((C, s), jnp.float32)
        elif s < 0:
            patches_ref[r0:r0 + C, :-s] = jnp.zeros((C, -s), jnp.float32)

    def conv(z, w_ref, b_ref):
        # im2col: each tap is a static lane-shifted, border-masked copy of the
        # flat (C, H*W) image stored at a static sublane offset of the scratch.
        # Only static slices / elementwise mults — no rolls, reshapes or concats.
        for t, s in taps:
            r0 = t * C
            if s == 0:                                        # centre tap
                patches_ref[r0:r0 + C, :] = z
            elif s > 0:
                patches_ref[r0:r0 + C, :HW - s] = (
                    z[:, s:] * mask_ref[t:t + 1, :HW - s])
            else:
                patches_ref[r0:r0 + C, -s:] = (
                    z[:, :s] * mask_ref[t:t + 1, -s:])
        # Single lane-dense MXU matmul per conv: (C, K*K*C) @ (K*K*C, H*W).
        acc = jnp.dot(w_ref[...], patches_ref[...].astype(mxu_dtype),
                      preferred_element_type=jnp.float32)
        return acc + b_ref[...]

    xb = x_ref[0].astype(jnp.float32)                    # (C, H*W) lane-dense
    y1 = jnp.maximum(conv(xb, w1_ref, b1_ref), 0.0)      # conv1 + bias + ReLU
    y2 = conv(y1, w2_ref, b2_ref)                        # conv2 + bias
    o_ref[0] = (xb + y2).astype(o_ref.dtype)             # residual add


def residual_block(x_nchw, w1, b1, w2, b2, *, stride=1, use_bf16_matmul=True):
    """x_nchw: (N, C, H, W); w*: (Cout, Cin, K, K) PyTorch layout; b*: (Cout,)."""
    N, Cin, H, W = x_nchw.shape
    Cout, Cin_w, K, K2 = w1.shape
    assert stride == 1, "residual add requires stride == 1"
    assert Cin == Cin_w and Cin == Cout, "residual add requires in_ch == out_ch"
    assert K == K2 and K % 2 == 1, "ZeroPad2d(K//2)+Conv2d keeps H,W only for odd K"
    C, HW, KK = Cin, H * W, K * K
    mxu_dtype = jnp.bfloat16 if use_bf16_matmul else jnp.float32

    # Glue: only free contiguous reshapes of the big tensors; weight reshapes tiny.
    x_flat = x_nchw.reshape(N, C, HW)
    w1_2d = jnp.transpose(w1, (0, 2, 3, 1)).reshape(C, KK * C).astype(mxu_dtype)
    w2_2d = jnp.transpose(w2, (0, 2, 3, 1)).reshape(C, KK * C).astype(mxu_dtype)
    b1c = b1.reshape(C, 1).astype(jnp.float32)
    b2c = b2.reshape(C, 1).astype(jnp.float32)
    masks = jnp.asarray(_build_border_masks(H, W, K))            # (K*K, H*W)

    kernel = functools.partial(residual_block_kernel,
                               H=H, W=W, K=K, C=C, mxu_dtype=mxu_dtype)

    itemsize = jnp.dtype(x_nchw.dtype).itemsize
    cost = pl.CostEstimate(
        flops=4 * KK * C * C * HW * N,                 # 2 convs x 2 flops/MAC
        transcendentals=0,
        bytes_accessed=int(2 * N * C * HW * itemsize
                           + 2 * KK * C * C * jnp.dtype(mxu_dtype).itemsize
                           + (KK * HW + 2 * C) * 4))

    out_flat = pl.pallas_call(
        kernel,
        out_shape=jax.ShapeDtypeStruct((N, C, HW), x_nchw.dtype),
        grid_spec=pltpu.PrefetchScalarGridSpec(
            num_scalar_prefetch=0,
            grid=(N,),
            in_specs=[
                pl.BlockSpec((1, C, HW), lambda b: (b, 0, 0)),   # x (also residual)
                pl.BlockSpec((C, KK * C), lambda b: (0, 0)),     # w1 (im2col order)
                pl.BlockSpec((C, 1), lambda b: (0, 0)),          # b1
                pl.BlockSpec((C, KK * C), lambda b: (0, 0)),     # w2
                pl.BlockSpec((C, 1), lambda b: (0, 0)),          # b2
                pl.BlockSpec((KK, HW), lambda b: (0, 0)),        # border masks
            ],
            out_specs=pl.BlockSpec((1, C, HW), lambda b: (b, 0, 0)),
            scratch_shapes=[pltpu.VMEM((KK * C, HW), jnp.float32)],
        ),
        compiler_params=pltpu.CompilerParams(
            dimension_semantics=("parallel",)),
        cost_estimate=cost,
    )(x_flat, w1_2d, b1c, w2_2d, b2c, masks)

    # TODO(synk): for large H*W (or N==1 on v7x's 2 TensorCores / 64 MiB VMEM),
    # add a second "parallel" grid axis over row tiles with a (K-1)-row halo and
    # raise vmem_limit_bytes; unnecessary at these working-set sizes.
    return out_flat.reshape(N, C, H, W)


def _reference(x_nchw, w1, b1, w2, b2):
    """Pure-JAX reference replicating the PyTorch forward exactly."""
    dn = ("NCHW", "OIHW", "NCHW")
    K = w1.shape[-1]
    P = K // 2
    pad = ((P, P), (P, P))
    y = lax.conv_general_dilated(x_nchw, w1, (1, 1), pad, dimension_numbers=dn)
    y = jnp.maximum(y + b1[None, :, None, None], 0.0)
    y = lax.conv_general_dilated(y, w2, (1, 1), pad, dimension_numbers=dn)
    y = y + b2[None, :, None, None]
    return x_nchw + y


if __name__ == "__main__":
    N, C, H, W, K = 2, 4, 16, 16, 3   # in_channels == out_channels == 4, stride 1

    key = jax.random.PRNGKey(0)
    k1, k2, k3, k4, k5 = jax.random.split(key, 5)
    x = jax.random.normal(k1, (N, C, H, W), dtype=jnp.float32)
    w1 = jax.random.normal(k2, (C, C, K, K), dtype=jnp.float32) * 0.1
    b1 = jax.random.normal(k3, (C,), dtype=jnp.float32) * 0.1
    w2 = jax.random.normal(k4, (C, C, K, K), dtype=jnp.float32) * 0.1
    b2 = jax.random.normal(k5, (C,), dtype=jnp.float32) * 0.1

    ref = jax.block_until_ready(_reference(x, w1, b1, w2, b2))

    # Exact f32-operand path.
    out_f32 = jax.block_until_ready(
        residual_block(x, w1, b1, w2, b2, stride=1, use_bf16_matmul=False))
    assert out_f32.shape == ref.shape
    assert float(jnp.max(jnp.abs(out_f32 - ref))) < 1e-4, "f32 path mismatch"

    # bf16-operand / f32-accumulate MXU path (perf default on v5e/v6e/v7x).
    out_bf16 = jax.block_until_ready(
        residual_block(x, w1, b1, w2, b2, stride=1, use_bf16_matmul=True))
    assert float(jnp.max(jnp.abs(out_bf16 - ref))) < 5e-2, "bf16 path mismatch"

    print("KERNEL_OK")
</pallas_src>

<mosaic_0001>
module attributes {stable_mosaic.version = 11 : i64} {
  func.func @residual_block_kernel(%arg0: i32, %arg1: memref<1x4x256xf32, #tpu.memory_space<vmem>>, %arg2: memref<4x36xf32, #tpu.memory_space<vmem>>, %arg3: memref<4x1xf32, #tpu.memory_space<vmem>>, %arg4: memref<4x36xf32, #tpu.memory_space<vmem>>, %arg5: memref<4x1xf32, #tpu.memory_space<vmem>>, %arg6: memref<9x256xf32, #tpu.memory_space<vmem>>, %arg7: memref<1x4x256xf32, #tpu.memory_space<vmem>>, %arg8: memref<36x256xf32, #tpu.memory_space<vmem>>) attributes {dimension_semantics = [#tpu.dimension_semantics<parallel>], iteration_bounds = array<i64: 2>, scalar_prefetch = 0 : i64, scratch_operands = 1 : i64, tpu.core_type = #tpu.core_type<tc>, window_params = [{transform_indices = @transform_0, window_bounds = array<i64: 1, 4, 256>}, {pipeline_mode = #tpu.pipeline_mode<synchronous>, transform_indices = @transform_1, window_bounds = array<i64: 4, 36>}, {pipeline_mode = #tpu.pipeline_mode<synchronous>, transform_indices = @transform_2, window_bounds = array<i64: 4, 1>}, {pipeline_mode = #tpu.pipeline_mode<synchronous>, transform_indices = @transform_3, window_bounds = array<i64: 4, 36>}, {pipeline_mode = #tpu.pipeline_mode<synchronous>, transform_indices = @transform_4, window_bounds = array<i64: 4, 1>}, {pipeline_mode = #tpu.pipeline_mode<synchronous>, transform_indices = @transform_5, window_bounds = array<i64: 9, 256>}, {transform_indices = @transform_6, window_bounds = array<i64: 1, 4, 256>}]} {
    %cst = arith.constant 0.000000e+00 : f32
    %0 = vector.broadcast %cst : f32 to vector<4x17xf32>
    %c0 = arith.constant 0 : index
    %c0_0 = arith.constant 0 : index
    %1 = vector.load %arg8[%c0, %c0_0] : memref<36x256xf32, #tpu.memory_space<vmem>>, vector<4x17xf32>
    tpu.vector_store %arg8[%c0, %c0_0], %0 {strides = array<i32>} : memref<36x256xf32, #tpu.memory_space<vmem>>, vector<4x17xf32>,
    %cst_1 = arith.constant 0.000000e+00 : f32
    %2 = vector.broadcast %cst_1 : f32 to vector<4x16xf32>
    %c4 = arith.constant 4 : index
    %c0_2 = arith.constant 0 : index
    %3 = vector.load %arg8[%c4, %c0_2] : memref<36x256xf32, #tpu.memory_space<vmem>>, vector<4x16xf32>
    tpu.vector_store %arg8[%c4, %c0_2], %2 {strides = array<i32>} : memref<36x256xf32, #tpu.memory_space<vmem>>, vector<4x16xf32>,
    %cst_3 = arith.constant 0.000000e+00 : f32
    %4 = vector.broadcast %cst_3 : f32 to vector<4x15xf32>
    %c8 = arith.constant 8 : index
    %c0_4 = arith.constant 0 : index
    %5 = vector.load %arg8[%c8, %c0_4] : memref<36x256xf32, #tpu.memory_space<vmem>>, vector<4x15xf32>
    tpu.vector_store %arg8[%c8, %c0_4], %4 {strides = array<i32>} : memref<36x256xf32, #tpu.memory_space<vmem>>, vector<4x15xf32>,
    %cst_5 = arith.constant 0.000000e+00 : f32
    %6 = vector.broadcast %cst_5 : f32 to vector<4x1xf32>
    %c12 = arith.constant 12 : index
    %c0_6 = arith.constant 0 : index
    %7 = vector.load %arg8[%c12, %c0_6] : memref<36x256xf32, #tpu.memory_space<vmem>>, vector<4x1xf32>
    tpu.vector_store %arg8[%c12, %c0_6], %6 {strides = array<i32>} : memref<36x256xf32, #tpu.memory_space<vmem>>, vector<4x1xf32>,
    %cst_7 = arith.constant 0.000000e+00 : f32
    %8 = vector.broadcast %cst_7 : f32 to vector<4x1xf32>
    %c20 = arith.constant 20 : index
    %c255 = arith.constant 255 : index
    %9 = vector.load %arg8[%c20, %c255] : memref<36x256xf32, #tpu.memory_space<vmem>>, vector<4x1xf32>
    tpu.vector_store %arg8[%c20, %c255], %8 {strides = array<i32>} : memref<36x256xf32, #tpu.memory_space<vmem>>, vector<4x1xf32>,
    %cst_8 = arith.constant 0.000000e+00 : f32
    %10 = vector.broadcast %cst_8 : f32 to vector<4x15xf32>
    %c24 = arith.constant 24 : index
    %c241 = arith.constant 241 : index
    %11 = vector.load %arg8[%c24, %c241] : memref<36x256xf32, #tpu.memory_space<vmem>>, vector<4x15xf32>
    tpu.vector_store %arg8[%c24, %c241], %10 {strides = array<i32>} : memref<36x256xf32, #tpu.memory_space<vmem>>, vector<4x15xf32>,
    %cst_9 = arith.constant 0.000000e+00 : f32
    %12 = vector.broadcast %cst_9 : f32 to vector<4x16xf32>
    %c28 = arith.constant 28 : index
    %c240 = arith.constant 240 : index
    %13 = vector.load %arg8[%c28, %c240] : memref<36x256xf32, #tpu.memory_space<vmem>>, vector<4x16xf32>
    tpu.vector_store %arg8[%c28, %c240], %12 {strides = array<i32>} : memref<36x256xf32, #tpu.memory_space<vmem>>, vector<4x16xf32>,
    %cst_10 = arith.constant 0.000000e+00 : f32
    %14 = vector.broadcast %cst_10 : f32 to vector<4x17xf32>
    %c32 = arith.constant 32 : index
    %c239 = arith.constant 239 : index
    %15 = vector.load %arg8[%c32, %c239] : memref<36x256xf32, #tpu.memory_space<vmem>>, vector<4x17xf32>
    tpu.vector_store %arg8[%c32, %c239], %14 {strides = array<i32>} : memref<36x256xf32, #tpu.memory_space<vmem>>, vector<4x17xf32>,
    %c0_11 = arith.constant 0 : index
    %c0_12 = arith.constant 0 : index
    %c0_13 = arith.constant 0 : index
    %16 = vector.load %arg1[%c0_11, %c0_12, %c0_13] : memref<1x4x256xf32, #tpu.memory_space<vmem>>, vector<1x4x256xf32>
    %17 = vector.shape_cast %16 : vector<1x4x256xf32> to vector<4x256xf32>
    %18 = vector.extract_strided_slice %17 {offsets = [0, 0], sizes = [4, 239], strides = [1, 1]} : vector<4x256xf32> to vector<4x239xf32>
    %c0_14 = arith.constant 0 : index
    %c17 = arith.constant 17 : index
    %19 = vector.load %arg6[%c0_14, %c17] : memref<9x256xf32, #tpu.memory_space<vmem>>, vector<1x239xf32>
    %20 = vector.broadcast %19 : vector<1x239xf32> to vector<4x239xf32>
    %21 = arith.mulf %18, %20 : vector<4x239xf32>
    %c0_15 = arith.constant 0 : index
    %c17_16 = arith.constant 17 : index
    %22 = vector.load %arg8[%c0_15, %c17_16] : memref<36x256xf32, #tpu.memory_space<vmem>>, vector<4x239xf32>
    tpu.vector_store %arg8[%c0_15, %c17_16], %21 {strides = array<i32>} : memref<36x256xf32, #tpu.memory_space<vmem>>, vector<4x239xf32>,
    %23 = vector.extract_strided_slice %17 {offsets = [0, 0], sizes = [4, 240], strides = [1, 1]} : vector<4x256xf32> to vector<4x240xf32>
    %c1 = arith.constant 1 : index
    %c16 = arith.constant 16 : index
    %24 = vector.load %arg6[%c1, %c16] : memref<9x256xf32, #tpu.memory_space<vmem>>, vector<1x240xf32>
    %25 = vector.broadcast %24 : vector<1x240xf32> to vector<4x240xf32>
    %26 = arith.mulf %23, %25 : vector<4x240xf32>
    %c4_17 = arith.constant 4 : index
    %c16_18 = arith.constant 16 : index
    %27 = vector.load %arg8[%c4_17, %c16_18] : memref<36x256xf32, #tpu.memory_space<vmem>>, vector<4x240xf32>
    tpu.vector_store %arg8[%c4_17, %c16_18], %26 {strides = array<i32>} : memref<36x256xf32, #tpu.memory_space<vmem>>, vector<4x240xf32>,
    %28 = vector.extract_strided_slice %17 {offsets = [0, 0], sizes = [4, 241], strides = [1, 1]} : vector<4x256xf32> to vector<4x241xf32>
    %c2 = arith.constant 2 : index
    %c15 = arith.constant 15 : index
    %29 = vector.load %arg6[%c2, %c15] : memref<9x256xf32, #tpu.memory_space<vmem>>, vector<1x241xf32>
    %30 = vector.broadcast %29 : vector<1x241xf32> to vector<4x241xf32>
    %31 = arith.mulf %28, %30 : vector<4x241xf32>
    %c8_19 = arith.constant 8 : index
    %c15_20 = arith.constant 15 : index
    %32 = vector.load %arg8[%c8_19, %c15_20] : memref<36x256xf32, #tpu.memory_space<vmem>>, vector<4x241xf32>
    tpu.vector_store %arg8[%c8_19, %c15_20], %31 {strides = array<i32>} : memref<36x256xf32, #tpu.memory_space<vmem>>, vector<4x241xf32>,
    %33 = vector.extract_strided_slice %17 {offsets = [0, 0], sizes = [4, 255], strides = [1, 1]} : vector<4x256xf32> to vector<4x255xf32>
    %c3 = arith.constant 3 : index
    %c1_21 = arith.constant 1 : index
    %34 = vector.load %arg6[%c3, %c1_21] : memref<9x256xf32, #tpu.memory_space<vmem>>, vector<1x255xf32>
    %35 = vector.broadcast %34 : vector<1x255xf32> to vector<4x255xf32>
    %36 = arith.mulf %33, %35 : vector<4x255xf32>
    %c12_22 = arith.constant 12 : index
    %c1_23 = arith.constant 1 : index
    %37 = vector.load %arg8[%c12_22, %c1_23] : memref<36x256xf32, #tpu.memory_space<vmem>>, vector<4x255xf32>
    tpu.vector_store %arg8[%c12_22, %c1_23], %36 {strides = array<i32>} : memref<36x256xf32, #tpu.memory_space<vmem>>, vector<4x255xf32>,
    %c16_24 = arith.constant 16 : index
    %c0_25 = arith.constant 0 : index
    %38 = vector.load %arg8[%c16_24, %c0_25] : memref<36x256xf32, #tpu.memory_space<vmem>>, vector<4x256xf32>
    tpu.vector_store %arg8[%c16_24, %c0_25], %17 {strides = array<i32>} : memref<36x256xf32, #tpu.memory_space<vmem>>, vector<4x256xf32>,
    %39 = vector.extract_strided_slice %17 {offsets = [0, 1], sizes = [4, 255], strides = [1, 1]} : vector<4x256xf32> to vector<4x255xf32>
    %c5 = arith.constant 5 : index
    %c0_26 = arith.constant 0 : index
    %40 = vector.load %arg6[%c5, %c0_26] : memref<9x256xf32, #tpu.memory_space<vmem>>, vector<1x255xf32>
    %41 = vector.broadcast %40 : vector<1x255xf32> to vector<4x255xf32>
    %42 = arith.mulf %39, %41 : vector<4x255xf32>
    %c20_27 = arith.constant 20 : index
    %c0_28 = arith.constant 0 : index
    %43 = vector.load %arg8[%c20_27, %c0_28] : memref<36x256xf32, #tpu.memory_space<vmem>>, vector<4x255xf32>
    tpu.vector_store %arg8[%c20_27, %c0_28], %42 {strides = array<i32>} : memref<36x256xf32, #tpu.memory_space<vmem>>, vector<4x255xf32>,
    %44 = vector.extract_strided_slice %17 {offsets = [0, 15], sizes = [4, 241], strides = [1, 1]} : vector<4x256xf32> to vector<4x241xf32>
    %c6 = arith.constant 6 : index
    %c0_29 = arith.constant 0 : index
    %45 = vector.load %arg6[%c6, %c0_29] : memref<9x256xf32, #tpu.memory_space<vmem>>, vector<1x241xf32>
    %46 = vector.broadcast %45 : vector<1x241xf32> to vector<4x241xf32>
    %47 = arith.mulf %44, %46 : vector<4x241xf32>
    %c24_30 = arith.constant 24 : index
    %c0_31 = arith.constant 0 : index
    %48 = vector.load %arg8[%c24_30, %c0_31] : memref<36x256xf32, #tpu.memory_space<vmem>>, vector<4x241xf32>
    tpu.vector_store %arg8[%c24_30, %c0_31], %47 {strides = array<i32>} : memref<36x256xf32, #tpu.memory_space<vmem>>, vector<4x241xf32>,
    %49 = vector.extract_strided_slice %17 {offsets = [0, 16], sizes = [4, 240], strides = [1, 1]} : vector<4x256xf32> to vector<4x240xf32>
    %c7 = arith.constant 7 : index
    %c0_32 = arith.constant 0 : index
    %50 = vector.load %arg6[%c7, %c0_32] : memref<9x256xf32, #tpu.memory_space<vmem>>, vector<1x240xf32>
    %51 = vector.broadcast %50 : vector<1x240xf32> to vector<4x240xf32>
    %52 = arith.mulf %49, %51 : vector<4x240xf32>
    %c28_33 = arith.constant 28 : index
    %c0_34 = arith.constant 0 : index
    %53 = vector.load %arg8[%c28_33, %c0_34] : memref<36x256xf32, #tpu.memory_space<vmem>>, vector<4x240xf32>
    tpu.vector_store %arg8[%c28_33, %c0_34], %52 {strides = array<i32>} : memref<36x256xf32, #tpu.memory_space<vmem>>, vector<4x240xf32>,
    %54 = vector.extract_strided_slice %17 {offsets = [0, 17], sizes = [4, 239], strides = [1, 1]} : vector<4x256xf32> to vector<4x239xf32>
    %c8_35 = arith.constant 8 : index
    %c0_36 = arith.constant 0 : index
    %55 = vector.load %arg6[%c8_35, %c0_36] : memref<9x256xf32, #tpu.memory_space<vmem>>, vector<1x239xf32>
    %56 = vector.broadcast %55 : vector<1x239xf32> to vector<4x239xf32>
    %57 = arith.mulf %54, %56 : vector<4x239xf32>
    %c32_37 = arith.constant 32 : index
    %c0_38 = arith.constant 0 : index
    %58 = vector.load %arg8[%c32_37, %c0_38] : memref<36x256xf32, #tpu.memory_space<vmem>>, vector<4x239xf32>
    tpu.vector_store %arg8[%c32_37, %c0_38], %57 {strides = array<i32>} : memref<36x256xf32, #tpu.memory_space<vmem>>, vector<4x239xf32>,
    %c0_39 = arith.constant 0 : index
    %c0_40 = arith.constant 0 : index
    %59 = vector.load %arg2[%c0_39, %c0_40] : memref<4x36xf32, #tpu.memory_space<vmem>>, vector<4x36xf32>
    %c0_41 = arith.constant 0 : index
    %c0_42 = arith.constant 0 : index
    %60 = vector.load %arg8[%c0_41, %c0_42] : memref<36x256xf32, #tpu.memory_space<vmem>>, vector<36x256xf32>
    %cst_43 = arith.constant dense<0.000000e+00> : vector<4x256xf32>
    %61 = tpu.matmul %59, %60, %cst_43 {dimension_numbers = #tpu.dot_dimension_numbers<[1], [0], [0], [1], [0, 0, 1, 1], [], []>} : vector<4x36xf32>, vector<36x256xf32>, vector<4x256xf32> -> vector<4x256xf32>
    %c0_44 = arith.constant 0 : index
    %c0_45 = arith.constant 0 : index
    %62 = vector.load %arg3[%c0_44, %c0_45] : memref<4x1xf32, #tpu.memory_space<vmem>>, vector<4x1xf32>
    %63 = vector.broadcast %62 : vector<4x1xf32> to vector<4x256xf32>
    %64 = arith.addf %61, %63 : vector<4x256xf32>
    %cst_46 = arith.constant 0.000000e+00 : f32
    %65 = vector.broadcast %cst_46 : f32 to vector<4x256xf32>
    %66 = arith.maximumf %64, %65 : vector<4x256xf32>
    %67 = vector.extract_strided_slice %66 {offsets = [0, 0], sizes = [4, 239], strides = [1, 1]} : vector<4x256xf32> to vector<4x239xf32>
    %c0_47 = arith.constant 0 : index
    %c17_48 = arith.constant 17 : index
    %68 = vector.load %arg6[%c0_47, %c17_48] : memref<9x256xf32, #tpu.memory_space<vmem>>, vector<1x239xf32>
    %69 = vector.broadcast %68 : vector<1x239xf32> to vector<4x239xf32>
    %70 = arith.mulf %67, %69 : vector<4x239xf32>
    %c0_49 = arith.constant 0 : index
    %c17_50 = arith.constant 17 : index
    %71 = vector.load %arg8[%c0_49, %c17_50] : memref<36x256xf32, #tpu.memory_space<vmem>>, vector<4x239xf32>
    tpu.vector_store %arg8[%c0_49, %c17_50], %70 {strides = array<i32>} : memref<36x256xf32, #tpu.memory_space<vmem>>, vector<4x239xf32>,
    %72 = vector.extract_strided_slice %66 {offsets = [0, 0], sizes = [4, 240], strides = [1, 1]} : vector<4x256xf32> to vector<4x240xf32>
    %c1_51 = arith.constant 1 : index
    %c16_52 = arith.constant 16 : index
    %73 = vector.load %arg6[%c1_51, %c16_52] : memref<9x256xf32, #tpu.memory_space<vmem>>, vector<1x240xf32>
    %74 = vector.broadcast %73 : vector<1x240xf32> to vector<4x240xf32>
    %75 = arith.mulf %72, %74 : vector<4x240xf32>
    %c4_53 = arith.constant 4 : index
    %c16_54 = arith.constant 16 : index
    %76 = vector.load %arg8[%c4_53, %c16_54] : memref<36x256xf32, #tpu.memory_space<vmem>>, vector<4x240xf32>
    tpu.vector_store %arg8[%c4_53, %c16_54], %75 {strides = array<i32>} : memref<36x256xf32, #tpu.memory_space<vmem>>, vector<4x240xf32>,
    %77 = vector.extract_strided_slice %66 {offsets = [0, 0], sizes = [4, 241], strides = [1, 1]} : vector<4x256xf32> to vector<4x241xf32>
    %c2_55 = arith.constant 2 : index
    %c15_56 = arith.constant 15 : index
    %78 = vector.load %arg6[%c2_55, %c15_56] : memref<9x256xf32, #tpu.memory_space<vmem>>, vector<1x241xf32>
    %79 = vector.broadcast %78 : vector<1x241xf32> to vector<4x241xf32>
    %80 = arith.mulf %77, %79 : vector<4x241xf32>
    %c8_57 = arith.constant 8 : index
    %c15_58 = arith.constant 15 : index
    %81 = vector.load %arg8[%c8_57, %c15_58] : memref<36x256xf32, #tpu.memory_space<vmem>>, vector<4x241xf32>
    tpu.vector_store %arg8[%c8_57, %c15_58], %80 {strides = array<i32>} : memref<36x256xf32, #tpu.memory_space<vmem>>, vector<4x241xf32>,
    %82 = vector.extract_strided_slice %66 {offsets = [0, 0], sizes = [4, 255], strides = [1, 1]} : vector<4x256xf32> to vector<4x255xf32>
    %c3_59 = arith.constant 3 : index
    %c1_60 = arith.constant 1 : index
    %83 = vector.load %arg6[%c3_59, %c1_60] : memref<9x256xf32, #tpu.memory_space<vmem>>, vector<1x255xf32>
    %84 = vector.broadcast %83 : vector<1x255xf32> to vector<4x255xf32>
    %85 = arith.mulf %82, %84 : vector<4x255xf32>
    %c12_61 = arith.constant 12 : index
    %c1_62 = arith.constant 1 : index
    %86 = vector.load %arg8[%c12_61, %c1_62] : memref<36x256xf32, #tpu.memory_space<vmem>>, vector<4x255xf32>
    tpu.vector_store %arg8[%c12_61, %c1_62], %85 {strides = array<i32>} : memref<36x256xf32, #tpu.memory_space<vmem>>, vector<4x255xf32>,
    %c16_63 = arith.constant 16 : index
    %c0_64 = arith.constant 0 : index
    %87 = vector.load %arg8[%c16_63, %c0_64] : memref<36x256xf32, #tpu.memory_space<vmem>>, vector<4x256xf32>
    tpu.vector_store %arg8[%c16_63, %c0_64], %66 {strides = array<i32>} : memref<36x256xf32, #tpu.memory_space<vmem>>, vector<4x256xf32>,
    %88 = vector.extract_strided_slice %66 {offsets = [0, 1], sizes = [4, 255], strides = [1, 1]} : vector<4x256xf32> to vector<4x255xf32>
    %c5_65 = arith.constant 5 : index
    %c0_66 = arith.constant 0 : index
    %89 = vector.load %arg6[%c5_65, %c0_66] : memref<9x256xf32, #tpu.memory_space<vmem>>, vector<1x255xf32>
    %90 = vector.broadcast %89 : vector<1x255xf32> to vector<4x255xf32>
    %91 = arith.mulf %88, %90 : vector<4x255xf32>
    %c20_67 = arith.constant 20 : index
    %c0_68 = arith.constant 0 : index
    %92 = vector.load %arg8[%c20_67, %c0_68] : memref<36x256xf32, #tpu.memory_space<vmem>>, vector<4x255xf32>
    tpu.vector_store %arg8[%c20_67, %c0_68], %91 {strides = array<i32>} : memref<36x256xf32, #tpu.memory_space<vmem>>, vector<4x255xf32>,
    %93 = vector.extract_strided_slice %66 {offsets = [0, 15], sizes = [4, 241], strides = [1, 1]} : vector<4x256xf32> to vector<4x241xf32>
    %c6_69 = arith.constant 6 : index
    %c0_70 = arith.constant 0 : index
    %94 = vector.load %arg6[%c6_69, %c0_70] : memref<9x256xf32, #tpu.memory_space<vmem>>, vector<1x241xf32>
    %95 = vector.broadcast %94 : vector<1x241xf32> to vector<4x241xf32>
    %96 = arith.mulf %93, %95 : vector<4x241xf32>
    %c24_71 = arith.constant 24 : index
    %c0_72 = arith.constant 0 : index
    %97 = vector.load %arg8[%c24_71, %c0_72] : memref<36x256xf32, #tpu.memory_space<vmem>>, vector<4x241xf32>
    tpu.vector_store %arg8[%c24_71, %c0_72], %96 {strides = array<i32>} : memref<36x256xf32, #tpu.memory_space<vmem>>, vector<4x241xf32>,
    %98 = vector.extract_strided_slice %66 {offsets = [0, 16], sizes = [4, 240], strides = [1, 1]} : vector<4x256xf32> to vector<4x240xf32>
    %c7_73 = arith.constant 7 : index
    %c0_74 = arith.constant 0 : index
    %99 = vector.load %arg6[%c7_73, %c0_74] : memref<9x256xf32, #tpu.memory_space<vmem>>, vector<1x240xf32>
    %100 = vector.broadcast %99 : vector<1x240xf32> to vector<4x240xf32>
    %101 = arith.mulf %98, %100 : vector<4x240xf32>
    %c28_75 = arith.constant 28 : index
    %c0_76 = arith.constant 0 : index
    %102 = vector.load %arg8[%c28_75, %c0_76] : memref<36x256xf32, #tpu.memory_space<vmem>>, vector<4x240xf32>
    tpu.vector_store %arg8[%c28_75, %c0_76], %101 {strides = array<i32>} : memref<36x256xf32, #tpu.memory_space<vmem>>, vector<4x240xf32>,
    %103 = vector.extract_strided_slice %66 {offsets = [0, 17], sizes = [4, 239], strides = [1, 1]} : vector<4x256xf32> to vector<4x239xf32>
    %c8_77 = arith.constant 8 : index
    %c0_78 = arith.constant 0 : index
    %104 = vector.load %arg6[%c8_77, %c0_78] : memref<9x256xf32, #tpu.memory_space<vmem>>, vector<1x239xf32>
    %105 = vector.broadcast %104 : vector<1x239xf32> to vector<4x239xf32>
    %106 = arith.mulf %103, %105 : vector<4x239xf32>
    %c32_79 = arith.constant 32 : index
    %c0_80 = arith.constant 0 : index
    %107 = vector.load %arg8[%c32_79, %c0_80] : memref<36x256xf32, #tpu.memory_space<vmem>>, vector<4x239xf32>
    tpu.vector_store %arg8[%c32_79, %c0_80], %106 {strides = array<i32>} : memref<36x256xf32, #tpu.memory_space<vmem>>, vector<4x239xf32>,
    %c0_81 = arith.constant 0 : index
    %c0_82 = arith.constant 0 : index
    %108 = vector.load %arg4[%c0_81, %c0_82] : memref<4x36xf32, #tpu.memory_space<vmem>>, vector<4x36xf32>
    %c0_83 = arith.constant 0 : index
    %c0_84 = arith.constant 0 : index
    %109 = vector.load %arg8[%c0_83, %c0_84] : memref<36x256xf32, #tpu.memory_space<vmem>>, vector<36x256xf32>
    %cst_85 = arith.constant dense<0.000000e+00> : vector<4x256xf32>
    %110 = tpu.matmul %108, %109, %cst_85 {dimension_numbers = #tpu.dot_dimension_numbers<[1], [0], [0], [1], [0, 0, 1, 1], [], []>} : vector<4x36xf32>, vector<36x256xf32>, vector<4x256xf32> -> vector<4x256xf32>
    %c0_86 = arith.constant 0 : index
    %c0_87 = arith.constant 0 : index
    %111 = vector.load %arg5[%c0_86, %c0_87] : memref<4x1xf32, #tpu.memory_space<vmem>>, vector<4x1xf32>
    %112 = vector.broadcast %111 : vector<4x1xf32> to vector<4x256xf32>
    %113 = arith.addf %110, %112 : vector<4x256xf32>
    %114 = arith.addf %17, %113 : vector<4x256xf32>
    %c0_88 = arith.constant 0 : index
    %c0_89 = arith.constant 0 : index
    %c0_90 = arith.constant 0 : index
    %115 = vector.load %arg7[%c0_88, %c0_89, %c0_90] : memref<1x4x256xf32, #tpu.memory_space<vmem>>, vector<1x4x256xf32>
    %116 = vector.shape_cast %115 : vector<1x4x256xf32> to vector<4x256xf32>
    %117 = vector.shape_cast %114 : vector<4x256xf32> to vector<1x4x256xf32>
    tpu.vector_store %arg7[%c0_88, %c0_89, %c0_90], %117 {strides = array<i32>} : memref<1x4x256xf32, #tpu.memory_space<vmem>>, vector<1x4x256xf32>,
    return
  }
  func.func @transform_0(%arg0: i32) -> (i32, i32, i32) {
    %c0_i32 = arith.constant 0 : i32
    %c0_i32_0 = arith.constant 0 : i32
    %c0_i32_1 = arith.constant 0 : i32
    return %arg0, %c0_i32, %c0_i32_0 : i32, i32, i32
  }
  func.func @transform_1(%arg0: i32) -> (i32, i32) {
    %c0_i32 = arith.constant 0 : i32
    %c0_i32_0 = arith.constant 0 : i32
    %c0_i32_1 = arith.constant 0 : i32
    return %c0_i32, %c0_i32_0 : i32, i32
  }
  func.func @transform_2(%arg0: i32) -> (i32, i32) {
    %c0_i32 = arith.constant 0 : i32
    %c0_i32_0 = arith.constant 0 : i32
    %c0_i32_1 = arith.constant 0 : i32
    return %c0_i32, %c0_i32_0 : i32, i32
  }
  func.func @transform_3(%arg0: i32) -> (i32, i32) {
    %c0_i32 = arith.constant 0 : i32
    %c0_i32_0 = arith.constant 0 : i32
    %c0_i32_1 = arith.constant 0 : i32
    return %c0_i32, %c0_i32_0 : i32, i32
  }
  func.func @transform_4(%arg0: i32) -> (i32, i32) {
    %c0_i32 = arith.constant 0 : i32
    %c0_i32_0 = arith.constant 0 : i32
    %c0_i32_1 = arith.constant 0 : i32
    return %c0_i32, %c0_i32_0 : i32, i32
  }
  func.func @transform_5(%arg0: i32) -> (i32, i32) {
    %c0_i32 = arith.constant 0 : i32
    %c0_i32_0 = arith.constant 0 : i32
    %c0_i32_1 = arith.constant 0 : i32
    return %c0_i32, %c0_i32_0 : i32, i32
  }
  func.func @transform_6(%arg0: i32) -> (i32, i32, i32) {
    %c0_i32 = arith.constant 0 : i32
    %c0_i32_0 = arith.constant 0 : i32
    %c0_i32_1 = arith.constant 0 : i32
    return %arg0, %c0_i32, %c0_i32_0 : i32, i32, i32
  }
}

</mosaic_0001>

<llo_original>
// kernel: tpu_custom_call.1
$region0: #{tpu_custom_call.1}
  #allocation0 [shape = 'u32[]', space=smem, size = 0x4, offset = 0x4, fixed_abs, tag = 'smem constant byte address 0x4 - core index']
  #allocation1 [shape = 'u32[72,128]{1,0:T(1,128)}', space=vmem, size = 0x9000, scoped, tag = 'internal scratch']
  #allocation2 [shape = 'f32[36,256]{1,0:T(8,128)}', space=vmem, size = 0xa000, scoped, tag = 'scratch operand']
  %s0 = inlined_call_operand.hbm [shape: f32[2,4,256], index: 0, kind: input, shape index: {}]
  %s1 = inlined_call_operand.vmem [shape: f32[4,36], index: 1, kind: input, shape index: {}]
  %s2 = inlined_call_operand.vmem [shape: f32[4,1], index: 2, kind: input, shape index: {}]
  %s3 = inlined_call_operand.vmem [shape: f32[4,36], index: 3, kind: input, shape index: {}]
  %s4 = inlined_call_operand.vmem [shape: f32[4,1], index: 4, kind: input, shape index: {}]
  %s5 = inlined_call_operand.hbm [shape: f32[9,256], index: 5, kind: input, shape index: {}]
  %s6 = inlined_call_operand.hbm [shape: f32[2,4,256], index: 6, kind: output, shape index: {}]
  %s7 = sld [smem:[#allocation0]]
  $region65: #{tpu_custom_call.1} parent=0
    _
  %s9 = ssub.s32 1, %s7
  %s10 = scalar_select 0, %s9, %s7
  $region1: #{tpu_custom_call.1} parent=0
    #allocation3 [shape = 'u8[8192]{0}', space=vmem, size = 0x2000, scoped, tag = 'input window, operand 0']
    #allocation4 [shape = 's32[2]{0}', space=sflag, size = 0x8, scoped, tag = 'scoped memory for tpu_custom_call.1']
    #allocation5 [shape = 's32[2]{0}', space=sflag, size = 0x8, scoped, tag = 'scoped memory for tpu_custom_call.1']
    #allocation6 [shape = 'u8[16384]{0}', space=vmem, size = 0x4000, scoped, tag = 'input window, operand 5, single buffered']
    #allocation7 [shape = 's32[1]{0}', space=sflag, size = 0x4, scoped, tag = 'scoped memory for tpu_custom_call.1']
    #allocation8 [shape = 'u8[8192]{0}', space=vmem, size = 0x2000, scoped, tag = 'output window, operand 0']
    %11 = vsyncpa [#allocation4], 0
    %s12 = scalar_lea.sflag [#allocation4], 1
    %13 = vsyncpa %s12, 0
    %14 = vsyncpa [#allocation7], 0
    %15 = vsyncpa [#allocation5], 0
    %s16 = scalar_lea.sflag [#allocation5], 1
    %17 = vsyncpa %s16, 0
    loop: start=0, step=1, limit=4
    $region2: #{tpu_custom_call.1} parent=1 // loop_pre_header
      _
    $region3: #{tpu_custom_call.1} parent=1 // loop_header
      %s19 = sphi 0, %s23
      %p20 = scmp.ge.s32.totalorder %s19, 4
      %s29 = sphi 0, %s31
      %s32 = sphi 0, %s29
      %s33 = sphi 0, %s32
      %s49 = sphi 0, %s33
      %s53 = sphi 0, %s53
      %s55 = sphi 0, %s53
      %s56 = sphi 0, %s55
      %s70 = sphi 0, %s56
      %s74 = sphi 0, %s74
      %s76 = sphi 0, %s74
      %s77 = sphi 0, %s76
      %s91 = sphi 0, %s77
      %s95 = sphi 0, %s95
      %s97 = sphi 0, %s95
      %s98 = sphi 0, %s97
      %s112 = sphi 0, %s98
      %s116 = sphi 0, %s116
      %s118 = sphi 0, %s116
      %s119 = sphi 0, %s118
      %s133 = sphi 0, %s119
      %s137 = sphi 0, %s137
      %s139 = sphi 0, %s137
      %s140 = sphi 0, %s139
      %s154 = sphi 0, %s140
      %s160 = sphi 0, %s162
      %s163 = sphi 0, %s160
      %s164 = sphi 0, %s163
      %s180 = sphi 0, %s164
    $region4: #{tpu_custom_call.1} parent=1 // loop_header_branch
      %22 = sbr.rel (%p20) target = $region8
    $region5: #{tpu_custom_call.1} parent=1 // loop_body
      %s24 = ssub.s32 %s19, 1
      %s25 = ssub.s32 %s19, 2
      %s26 = sadd.s32 %s19, 1
      %s27 = ssub.s32 %s19, %s26
      %p28 = scmp.eq.s32.totalorder %s27, 0
      %s30 = sadd.s32 %s29, 1
      %s31 = scalar_select %p28, %s29, %s30
      %p34 = pneg %p28
      %p35 = scmp.eq.s32.totalorder %s19, 1
      %p36 = por %p34, %p35
      %p37 = scmp.ne.s32.totalorder %s29, %s32
      %p38 = scmp.eq.s32.totalorder %s19, 0
      %p39 = por %p37, %p38
      %p40 = scmp.ne.s32.totalorder %s29, %s32
      %p41 = scmp.eq.s32.totalorder %s24, 1
      %p42 = por %p40, %p41
      %p43 = scmp.ne.s32.totalorder %s32, %s33
      %p44 = scmp.eq.s32.totalorder %s24, 0
      %p45 = por %p43, %p44
      %p46 = scmp.ne.s32.totalorder %s32, %s33
      %p47 = scmp.eq.s32.totalorder %s25, 1
      %p48 = por %p46, %p47
      %p50 = scmp.ne.s32.totalorder %s33, %s49
      %p51 = scmp.eq.s32.totalorder %s25, 0
      %p52 = por %p50, %p51
      %s54 = sadd.s32 %s53, 1
      %p57 = scmp.eq.s32.totalorder %s19, 1
      %p58 = scmp.ne.s32.totalorder %s53, %s55
      %p59 = scmp.eq.s32.totalorder %s19, 0
      %p60 = por %p58, %p59
      %p61 = scmp.ne.s32.totalorder %s53, %s55
      %p62 = scmp.eq.s32.totalorder %s24, 1
      %p63 = por %p61, %p62
      %p64 = scmp.ne.s32.totalorder %s55, %s56
      %p65 = scmp.eq.s32.totalorder %s24, 0
      %p66 = por %p64, %p65
      %p67 = scmp.ne.s32.totalorder %s55, %s56
      %p68 = scmp.eq.s32.totalorder %s25, 1
      %p69 = por %p67, %p68
      %p71 = scmp.ne.s32.totalorder %s56, %s70
      %p72 = scmp.eq.s32.totalorder %s25, 0
      %p73 = por %p71, %p72
      %s75 = sadd.s32 %s74, 1
      %p78 = scmp.eq.s32.totalorder %s19, 1
      %p79 = scmp.ne.s32.totalorder %s74, %s76
      %p80 = scmp.eq.s32.totalorder %s19, 0
      %p81 = por %p79, %p80
      %p82 = scmp.ne.s32.totalorder %s74, %s76
      %p83 = scmp.eq.s32.totalorder %s24, 1
      %p84 = por %p82, %p83
      %p85 = scmp.ne.s32.totalorder %s76, %s77
      %p86 = scmp.eq.s32.totalorder %s24, 0
      %p87 = por %p85, %p86
      %p88 = scmp.ne.s32.totalorder %s76, %s77
      %p89 = scmp.eq.s32.totalorder %s25, 1
      %p90 = por %p88, %p89
      %p92 = scmp.ne.s32.totalorder %s77, %s91
      %p93 = scmp.eq.s32.totalorder %s25, 0
      %p94 = por %p92, %p93
      %s96 = sadd.s32 %s95, 1
      %p99 = scmp.eq.s32.totalorder %s19, 1
      %p100 = scmp.ne.s32.totalorder %s95, %s97
      %p101 = scmp.eq.s32.totalorder %s19, 0
      %p102 = por %p100, %p101
      %p103 = scmp.ne.s32.totalorder %s95, %s97
      %p104 = scmp.eq.s32.totalorder %s24, 1
      %p105 = por %p103, %p104
      %p106 = scmp.ne.s32.totalorder %s97, %s98
      %p107 = scmp.eq.s32.totalorder %s24, 0
      %p108 = por %p106, %p107
      %p109 = scmp.ne.s32.totalorder %s97, %s98
      %p110 = scmp.eq.s32.totalorder %s25, 1
      %p111 = por %p109, %p110
      %p113 = scmp.ne.s32.totalorder %s98, %s112
      %p114 = scmp.eq.s32.totalorder %s25, 0
      %p115 = por %p113, %p114
      %s117 = sadd.s32 %s116, 1
      %p120 = scmp.eq.s32.totalorder %s19, 1
      %p121 = scmp.ne.s32.totalorder %s116, %s118
      %p122 = scmp.eq.s32.totalorder %s19, 0
      %p123 = por %p121, %p122
      %p124 = scmp.ne.s32.totalorder %s116, %s118
      %p125 = scmp.eq.s32.totalorder %s24, 1
      %p126 = por %p124, %p125
      %p127 = scmp.ne.s32.totalorder %s118, %s119
      %p128 = scmp.eq.s32.totalorder %s24, 0
      %p129 = por %p127, %p128
      %p130 = scmp.ne.s32.totalorder %s118, %s119
      %p131 = scmp.eq.s32.totalorder %s25, 1
      %p132 = por %p130, %p131
      %p134 = scmp.ne.s32.totalorder %s119, %s133
      %p135 = scmp.eq.s32.totalorder %s25, 0
      %p136 = por %p134, %p135
      %s138 = sadd.s32 %s137, 1
      %p141 = scmp.eq.s32.totalorder %s19, 1
      %p142 = scmp.ne.s32.totalorder %s137, %s139
      %p143 = scmp.eq.s32.totalorder %s19, 0
      %p144 = por %p142, %p143
      %p145 = scmp.ne.s32.totalorder %s137, %s139
      %p146 = scmp.eq.s32.totalorder %s24, 1
      %p147 = por %p145, %p146
      %p148 = scmp.ne.s32.totalorder %s139, %s140
      %p149 = scmp.eq.s32.totalorder %s24, 0
      %p150 = por %p148, %p149
      %p151 = scmp.ne.s32.totalorder %s139, %s140
      %p152 = scmp.eq.s32.totalorder %s25, 1
      %p153 = por %p151, %p152
      %p155 = scmp.ne.s32.totalorder %s140, %s154
      %p156 = scmp.eq.s32.totalorder %s25, 0
      %p157 = por %p155, %p156
      %s158 = ssub.s32 %s19, %s26
      %p159 = scmp.eq.s32.totalorder %s158, 0
      %s161 = sadd.s32 %s160, 1
      %s162 = scalar_select %p159, %s160, %s161
      %p165 = pneg %p159
      %p166 = scmp.eq.s32.totalorder %s19, 1
      %p167 = por %p165, %p166
      %p168 = scmp.ne.s32.totalorder %s160, %s163
      %p169 = scmp.eq.s32.totalorder %s19, 0
      %p170 = por %p168, %p169
      %p171 = scmp.ne.s32.totalorder %s160, %s163
      %p172 = scmp.eq.s32.totalorder %s24, 1
      %p173 = por %p171, %p172
      %p174 = scmp.ne.s32.totalorder %s163, %s164
      %p175 = scmp.eq.s32.totalorder %s24, 0
      %p176 = por %p174, %p175
      %p177 = scmp.ne.s32.totalorder %s163, %s164
      %p178 = scmp.eq.s32.totalorder %s25, 1
      %p179 = por %p177, %p178
      %p181 = scmp.ne.s32.totalorder %s164, %s180
      %p182 = scmp.eq.s32.totalorder %s25, 0
      %p183 = por %p181, %p182
      %p184 = scmp.le.s32.totalorder 1, %s19
      %p185 = scmp.lt.s32.totalorder %s19, 3
      %p186 = pnand %p184, %p185
      %p187 = pneg %p186
      // Predicated region
      $region9: #{tpu_custom_call.1} parent=5 // pred_check
        _
      $region10: #{tpu_custom_call.1} parent=5 // pred_check_branch
        %189 = sbr.rel (%p186) target = $region12
      $region11: #{tpu_custom_call.1} parent=5 // pred_region
        %s190 = ssub.s32 %s19, 1
        // Predicated region
        $region13: #{tpu_custom_call.1} parent=11 // pred_check
          %p191 = pneg %p66
        $region14: #{tpu_custom_call.1} parent=11 // pred_check_branch
          %193 = sbr.rel (%p191) target = $region16
        $region15: #{tpu_custom_call.1} parent=11 // pred_region
          _
        $region16: #{tpu_custom_call.1} parent=11 // pred_fallthru
          _
        // Predicated region
        $region17: #{tpu_custom_call.1} parent=11 // pred_check
          %p194 = pneg %p87
        $region18: #{tpu_custom_call.1} parent=11 // pred_check_branch
          %196 = sbr.rel (%p194) target = $region20
        $region19: #{tpu_custom_call.1} parent=11 // pred_region
          _
        $region20: #{tpu_custom_call.1} parent=11 // pred_fallthru
          _
        // Predicated region
        $region21: #{tpu_custom_call.1} parent=11 // pred_check
          %p197 = pneg %p108
        $region22: #{tpu_custom_call.1} parent=11 // pred_check_branch
          %199 = sbr.rel (%p197) target = $region24
        $region23: #{tpu_custom_call.1} parent=11 // pred_region
          _
        $region24: #{tpu_custom_call.1} parent=11 // pred_fallthru
          _
        // Predicated region
        $region25: #{tpu_custom_call.1} parent=11 // pred_check
          %p200 = pneg %p129
        $region26: #{tpu_custom_call.1} parent=11 // pred_check_branch
          %202 = sbr.rel (%p200) target = $region28
        $region27: #{tpu_custom_call.1} parent=11 // pred_region
          _
        $region28: #{tpu_custom_call.1} parent=11 // pred_fallthru
          _
        // Predicated region
        $region29: #{tpu_custom_call.1} parent=11 // pred_check
          %p203 = pneg %p150
        $region30: #{tpu_custom_call.1} parent=11 // pred_check_branch
          %205 = sbr.rel (%p203) target = $region32
        $region31: #{tpu_custom_call.1} parent=11 // pred_region
          %207 = vsyncadd [#allocation7], 0
          %s208 = sshll.u32 %s5, 4
          %s209 = int_to_ptr.hbm [resolvable:$true] %s208
          %s210 = sshll.u32 [#allocation6], 4
          %s211 = int_to_ptr.vmem [resolvable:$true] %s210
          %216 = dma.hbm_to_vmem [thread:$0]  %s209, 512, %s211, [#allocation7], 256, 256, 16
        $region32: #{tpu_custom_call.1} parent=11 // pred_fallthru
          _
      $region12: #{tpu_custom_call.1} parent=5 // pred_fallthru
        _
      %p217 = scmp.lt.s32.totalorder %s19, 2
      // Predicated region
      $region33: #{tpu_custom_call.1} parent=5 // pred_check
        %p218 = pneg %p217
      $region34: #{tpu_custom_call.1} parent=5 // pred_check_branch
        %220 = sbr.rel (%p218) target = $region36
      $region35: #{tpu_custom_call.1} parent=5 // pred_region
        // Predicated region
        $region37: #{tpu_custom_call.1} parent=35 // pred_check
          %p221 = pneg %p39
        $region38: #{tpu_custom_call.1} parent=35 // pred_check_branch
          %223 = sbr.rel (%p221) target = $region40
        $region39: #{tpu_custom_call.1} parent=35 // pred_region
          %s224 = sand.u32 %s29, 1
          %s225 = scalar_lea.sflag [#allocation4], %s224
          %s226 = sand.u32 %s29, 1
          %s227 = smul.addr %s226, 8
          %s228 = scalar_lea.vmem [#allocation3], %s227
          %230 = vsyncadd %s225, 0
          %s231 = smul.addr %s19, 2
          %s232 = smul.addr %s231, 4
          %s233 = scalar_lea.hbm %s0, %s232
          %s235 = sshll.u32 %s233, 4
          %s236 = int_to_ptr.hbm [resolvable:$true] %s235
          %s237 = sshll.u32 %s228, 4
          %s238 = int_to_ptr.vmem [resolvable:$true] %s237
          %240 = dma.hbm_to_vmem [thread:$0]  %s236, 128, %s238, %s225
        $region40: #{tpu_custom_call.1} parent=35 // pred_fallthru
          _
      $region36: #{tpu_custom_call.1} parent=5 // pred_fallthru
        _
      %p241 = scmp.le.s32.totalorder 1, %s19
      %p242 = scmp.lt.s32.totalorder %s19, 3
      %p243 = pnand %p241, %p242
      %p244 = pneg %p243
      // Predicated region
      $region41: #{tpu_custom_call.1} parent=5 // pred_check
        _
      $region42: #{tpu_custom_call.1} parent=5 // pred_check_branch
        %246 = sbr.rel (%p243) target = $region44
      $region43: #{tpu_custom_call.1} parent=5 // pred_region
        %s247 = ssub.s32 %s19, 1
        %s248 = sand.u32 %s32, 1
        %s249 = scalar_lea.sflag [#allocation4], %s248
        %s250 = sand.u32 %s32, 1
        %s251 = smul.addr %s250, 8
        %s252 = scalar_lea.vmem [#allocation3], %s251
        // Predicated region
        $region45: #{tpu_custom_call.1} parent=43 // pred_check
          %p253 = pneg %p45
        $region46: #{tpu_custom_call.1} parent=43 // pred_check_branch
          %255 = sbr.rel (%p253) target = $region48
        $region47: #{tpu_custom_call.1} parent=43 // pred_region
          %257 = dma.done %s249, 128
        $region48: #{tpu_custom_call.1} parent=43 // pred_fallthru
          _
        // Predicated region
        $region49: #{tpu_custom_call.1} parent=43 // pred_check
          %p258 = pneg %p150
        $region50: #{tpu_custom_call.1} parent=43 // pred_check_branch
          %260 = sbr.rel (%p258) target = $region52
        $region51: #{tpu_custom_call.1} parent=43 // pred_region
          %262 = dma.done [#allocation7], 512
        $region52: #{tpu_custom_call.1} parent=43 // pred_fallthru
          _
        %s263 = sand.u32 %s32, 1
        %s264 = scalar_lea.sflag [#allocation4], %s263
        %s265 = sand.u32 %s32, 1
        %s266 = smul.addr %s265, 8
        %s267 = scalar_lea.vmem [#allocation3], %s266
        %p268 = pneg %p45
        %p269 = pneg %p42
        %p270 = pneg %p66
        %p271 = pneg %p63
        %p272 = pneg %p87
        %p273 = pneg %p84
        %p274 = pneg %p108
        %p275 = pneg %p105
        %p276 = pneg %p129
        %p277 = pneg %p126
        %p278 = pneg %p150
        %p279 = pneg %p147
        %p280 = pneg %p176
        %p281 = pneg %p173
        %s282 = sand.u32 %s163, 1
        %s283 = scalar_lea.sflag [#allocation5], %s282
        %s284 = sand.u32 %s163, 1
        %s285 = smul.addr %s284, 8
        %s286 = scalar_lea.vmem [#allocation8], %s285
        %vm287 = vcmask 134144
        %288 = vst.msk [vmem:[#allocation2] sm:$0xf] %vm287, 0.0
        %vm289 = vcmask 130052
        %290 = vst.msk [vmem:[#allocation2] sm:$0xf0] %vm289, 0.0
        %vm291 = vcmask 117760
        %292 = vst.msk [vmem:[#allocation2 + $0x10] sm:$0xf] %vm291, 0.0
        %vm293 = vcmask 7172
        %294 = vst.msk [vmem:[#allocation2 + $0x10] sm:$0xf0] %vm293, 0.0
        %vm295 = vcmask 1048572
        %296 = vst.msk [vmem:[#allocation2 + $0x28] sm:$0xf0] %vm295, 0.0
        %vm297 = vcmask 1044360
        %298 = vst.msk [vmem:[#allocation2 + $0x38] sm:$0xf] %vm297, 0.0
        %vm299 = vcmask 1048452
        %300 = vst.msk [vmem:[#allocation2 + $0x38] sm:$0xf0] %vm299, 0.0
        %vm301 = vcmask 1044344
        %302 = vst.msk [vmem:[#allocation2 + $0x48] sm:$0xf] %vm301, 0.0
        %v303 = vld [vmem:[%s252] sm:$0xff]
        %v304 = vld [vmem:[#allocation6] ss:$8 sm:$0x3]
        %v306 = vperm.slane %v304, 0
        %v307 = vperm.slane %v304, 1
        %v308 = vrot.slane %v307, 4
        %vm309 = vcmask 1043456
        %v310 = vsel %vm309, %v306, %v308
        %311 = vrot.lane.b32.xlu0 %v310, 111
        %v312 = vpop.permute.xlu0 %311
        %v313 = vrot.slane %v312, 4
        %vm314 = vcmask 908288
        %v315 = vsel %vm314, %v312, %v313
        %v317 = vmul.f32 %v303, %v315
        %319 = vst [vmem:[#allocation1] ss:$2 sm:$0xff] %v317
        %v320 = vld.sshfl [vmem:[#allocation1] sm:$0xff pattern:$0x75316420]
        %v321 = vld.sshfl [vmem:[#allocation1 + $0x8] sm:$0xff pattern:$0x75316420]
        %322 = vrot.lane.b32.xlu0 %v320, 17
        %v323 = vpop.permute.xlu0 %322
        %324 = vrot.lane.b32.xlu0 %v321, 17
        %v325 = vpop.permute.xlu0 %324
        %vm326 = vcmask 138240
        %v327 = vsel %vm326, %v323, %v325
        %vm330 = vcmask 1043592
        %331 = vst.msk [vmem:[#allocation2] sm:$0xf] %vm330, %v323
        %332 = vst [vmem:[#allocation2 + $0x8] sm:$0xf] %v327
        %s333 = scalar_lea.vmem [#allocation6], 1
        %v334 = vld [vmem:[%s333] ss:$8 sm:$0x3]
        %v336 = vperm.slane %v334, 0
        %v337 = vperm.slane %v334, 1
        %v338 = vrot.slane %v337, 4
        %v339 = vsel %vm309, %v336, %v338
        %340 = vrot.lane.b32.xlu0 %v339, 112
        %v341 = vpop.permute.xlu0 %340
        %v342 = vrot.slane %v341, 4
        %vm343 = vcmask 916480
        %v344 = vsel %vm343, %v341, %v342
        %v346 = vmul.f32 %v303, %v344
        %s348 = scalar_lea.vmem [#allocation1], 1
        %349 = vst [vmem:[%s348] ss:$2 sm:$0xff] %v346
        %v350 = vld.sshfl [vmem:[#allocation1] sm:$0xff pattern:$0x75316420]
        %v351 = vld.sshfl [vmem:[#allocation1 + $0x8] sm:$0xff pattern:$0x75316420]
        %352 = vrot.lane.b32.xlu0 %v350, 16
        %v353 = vpop.permute.xlu0 %352
        %354 = vrot.lane.b32.xlu0 %v351, 16
        %v355 = vpop.permute.xlu0 %354
        %vm356 = vcmask 130048
        %v357 = vsel %vm356, %v353, %v355
        %vm360 = vcmask 1047684
        %361 = vst.msk [vmem:[#allocation2] sm:$0xf0] %vm360, %v353
        %362 = vst [vmem:[#allocation2 + $0x8] sm:$0xf0] %v357
        %s363 = scalar_lea.vmem [#allocation6], 2
        %v364 = vld [vmem:[%s363] ss:$8 sm:$0x3]
        %v366 = vperm.slane %v364, 0
        %v367 = vperm.slane %v364, 1
        %v368 = vrot.slane %v367, 4
        %v369 = vsel %vm309, %v366, %v368
        %370 = vrot.lane.b32.xlu0 %v369, 113
        %v371 = vpop.permute.xlu0 %370
        %v372 = vrot.slane %v371, 4
        %vm373 = vcmask 924672
        %v374 = vsel %vm373, %v371, %v372
        %v376 = vmul.f32 %v303, %v374
        %378 = vst [vmem:[#allocation1] ss:$2 sm:$0xff] %v376
        %v379 = vld.sshfl [vmem:[#allocation1] sm:$0xff pattern:$0x75316420]
        %v380 = vld.sshfl [vmem:[#allocation1 + $0x8] sm:$0xff pattern:$0x75316420]
        %381 = vrot.lane.b32.xlu0 %v379, 15
        %v382 = vpop.permute.xlu0 %381
        %383 = vrot.lane.b32.xlu0 %v380, 15
        %v384 = vpop.permute.xlu0 %383
        %vm385 = vcmask 121856
        %v386 = vsel %vm385, %v382, %v384
        %vm389 = vcmask 1043576
        %390 = vst.msk [vmem:[#allocation2 + $0x10] sm:$0xf] %vm389, %v382
        %391 = vst [vmem:[#allocation2 + $0x18] sm:$0xf] %v386
        %s392 = scalar_lea.vmem [#allocation6], 3
        %v393 = vld [vmem:[%s392] ss:$8 sm:$0x3]
        %v395 = vperm.slane %v393, 0
        %v396 = vperm.slane %v393, 1
        %v397 = vrot.slane %v396, 4
        %v398 = vsel %vm309, %v395, %v397
        %399 = vrot.lane.b32.xlu0 %v398, 127
        %v400 = vpop.permute.xlu0 %399
        %v401 = vrot.slane %v400, 4
        %vm402 = vcmask 1039360
        %v403 = vsel %vm402, %v400, %v401
        %v405 = vmul.f32 %v303, %v403
        %s407 = scalar_lea.vmem [#allocation1], 1
        %408 = vst [vmem:[%s407] ss:$2 sm:$0xff] %v405
        %v409 = vld.sshfl [vmem:[#allocation1] sm:$0xff pattern:$0x75316420]
        %v410 = vld.sshfl [vmem:[#allocation1 + $0x8] sm:$0xff pattern:$0x75316420]
        %411 = vrot.lane.b32.xlu0 %v409, 1
        %v412 = vpop.permute.xlu0 %411
        %413 = vrot.lane.b32.xlu0 %v410, 1
        %v414 = vpop.permute.xlu0 %413
        %vm415 = vcmask 7168
        %v416 = vsel %vm415, %v412, %v414
        %vm419 = vcmask 1047564
        %420 = vst.msk [vmem:[#allocation2 + $0x10] sm:$0xf0] %vm419, %v412
        %421 = vst [vmem:[#allocation2 + $0x18] sm:$0xf0] %v416
        %423 = vst [vmem:[#allocation1] ss:$2 sm:$0xff] %v303
        %v424 = vld.sshfl [vmem:[#allocation1] sm:$0xff pattern:$0x75316420]
        %v425 = vld.sshfl [vmem:[#allocation1 + $0x8] sm:$0xff pattern:$0x75316420]
        %428 = vst [vmem:[#allocation2 + $0x20] sm:$0xf] %v424
        %429 = vst [vmem:[#allocation2 + $0x28] sm:$0xf] %v425
        %s430 = scalar_lea.vmem [#allocation6], 5
        %v431 = vld [vmem:[%s430] ss:$8 sm:$0x3]
        %v433 = vperm.slane %v431, 0
        %v434 = vperm.slane %v431, 1
        %v435 = vrot.slane %v434, 4
        %v436 = vsel %vm309, %v433, %v435
        %437 = vrot.lane.b32.xlu0 %v436, 1
        %v438 = vpop.permute.xlu0 %437
        %v439 = vrot.slane %v438, 4
        %v440 = vsel %vm415, %v439, %v438
        %v442 = vmul.f32 %v303, %v440
        %s444 = scalar_lea.vmem [#allocation1], 1
        %445 = vst [vmem:[%s444] ss:$2 sm:$0xff] %v442
        %v446 = vld.sshfl [vmem:[#allocation1] sm:$0xff pattern:$0x75316420]
        %v447 = vld.sshfl [vmem:[#allocation1 + $0x8] sm:$0xff pattern:$0x75316420]
        %448 = vrot.lane.b32.xlu0 %v446, 127
        %v449 = vpop.permute.xlu0 %448
        %450 = vrot.lane.b32.xlu0 %v447, 127
        %v451 = vpop.permute.xlu0 %450
        %v452 = vsel %vm402, %v449, %v451
        %455 = vst [vmem:[#allocation2 + $0x20] sm:$0xf0] %v452
        %vm456 = vcmask 1039364
        %457 = vst.msk [vmem:[#allocation2 + $0x28] sm:$0xf0] %vm456, %v451
        %s458 = scalar_lea.vmem [#allocation6], 6
        %v459 = vld [vmem:[%s458] ss:$8 sm:$0x3]
        %v461 = vperm.slane %v459, 0
        %v462 = vperm.slane %v459, 1
        %v463 = vrot.slane %v462, 4
        %v464 = vsel %vm309, %v461, %v463
        %465 = vrot.lane.b32.xlu0 %v464, 15
        %v466 = vpop.permute.xlu0 %465
        %v467 = vrot.slane %v466, 4
        %v468 = vsel %vm385, %v467, %v466
        %v470 = vmul.f32 %v303, %v468
        %472 = vst [vmem:[#allocation1] ss:$2 sm:$0xff] %v470
        %v473 = vld.sshfl [vmem:[#allocation1] sm:$0xff pattern:$0x75316420]
        %v474 = vld.sshfl [vmem:[#allocation1 + $0x8] sm:$0xff pattern:$0x75316420]
        %475 = vrot.lane.b32.xlu0 %v473, 113
        %v476 = vpop.permute.xlu0 %475
        %477 = vrot.lane.b32.xlu0 %v474, 113
        %v478 = vpop.permute.xlu0 %477
        %v479 = vsel %vm373, %v476, %v478
        %482 = vst [vmem:[#allocation2 + $0x30] sm:$0xf] %v479
        %vm483 = vcmask 920576
        %484 = vst.msk [vmem:[#allocation2 + $0x38] sm:$0xf] %vm483, %v478
        %s485 = scalar_lea.vmem [#allocation6], 7
        %v486 = vld [vmem:[%s485] ss:$8 sm:$0x3]
        %v488 = vperm.slane %v486, 0
        %v489 = vperm.slane %v486, 1
        %v490 = vrot.slane %v489, 4
        %v491 = vsel %vm309, %v488, %v490
        %492 = vrot.lane.b32.xlu0 %v491, 16
        %v493 = vpop.permute.xlu0 %492
        %v494 = vrot.slane %v493, 4
        %v495 = vsel %vm356, %v494, %v493
        %v497 = vmul.f32 %v303, %v495
        %s499 = scalar_lea.vmem [#allocation1], 1
        %500 = vst [vmem:[%s499] ss:$2 sm:$0xff] %v497
        %v501 = vld.sshfl [vmem:[#allocation1] sm:$0xff pattern:$0x75316420]
        %v502 = vld.sshfl [vmem:[#allocation1 + $0x8] sm:$0xff pattern:$0x75316420]
        %503 = vrot.lane.b32.xlu0 %v501, 112
        %v504 = vpop.permute.xlu0 %503
        %505 = vrot.lane.b32.xlu0 %v502, 112
        %v506 = vpop.permute.xlu0 %505
        %v507 = vsel %vm343, %v504, %v506
        %510 = vst [vmem:[#allocation2 + $0x30] sm:$0xf0] %v507
        %vm511 = vcmask 916484
        %512 = vst.msk [vmem:[#allocation2 + $0x38] sm:$0xf0] %vm511, %v506
        %s513 = scalar_lea.vmem [#allocation6], 16
        %v514 = vld [vmem:[%s513] ss:$8 sm:$0x3]
        %v516 = vperm.slane %v514, 0
        %v517 = vperm.slane %v514, 1
        %v518 = vrot.slane %v517, 4
        %v519 = vsel %vm309, %v516, %v518
        %520 = vrot.lane.b32.xlu0 %v519, 17
        %v521 = vpop.permute.xlu0 %520
        %v522 = vrot.slane %v521, 4
        %v523 = vsel %vm326, %v522, %v521
        %v525 = vmul.f32 %v303, %v523
        %527 = vst [vmem:[#allocation1] ss:$2 sm:$0xff] %v525
        %v528 = vld.sshfl [vmem:[#allocation1] sm:$0xff pattern:$0x75316420]
        %v529 = vld.sshfl [vmem:[#allocation1 + $0x8] sm:$0xff pattern:$0x75316420]
        %530 = vrot.lane.b32.xlu0 %v528, 111
        %v531 = vpop.permute.xlu0 %530
        %532 = vrot.lane.b32.xlu0 %v529, 111
        %v533 = vpop.permute.xlu0 %532
        %v534 = vsel %vm314, %v531, %v533
        %537 = vst [vmem:[#allocation2 + $0x40] sm:$0xf] %v534
        %vm538 = vcmask 904192
        %539 = vst.msk [vmem:[#allocation2 + $0x48] sm:$0xf] %vm538, %v533
        %v540 = vld [vmem:[%s1] sm:$0xf]
        %v541 = vld [vmem:[#allocation2] sm:$0xff]
        %v542 = vld [vmem:[#allocation2 + $0x8] sm:$0xff]
        %v543 = vld [vmem:[#allocation2 + $0x10] sm:$0xff]
        %v544 = vld [vmem:[#allocation2 + $0x18] sm:$0xff]
        %v545 = vld [vmem:[#allocation2 + $0x20] sm:$0xff]
        %v546 = vld [vmem:[#allocation2 + $0x28] sm:$0xff]
        %v547 = vld [vmem:[#allocation2 + $0x30] sm:$0xff]
        %v548 = vld [vmem:[#allocation2 + $0x38] sm:$0xff]
        %v549 = vld [vmem:[#allocation2 + $0x40] sm:$0xf]
        %v550 = vld [vmem:[#allocation2 + $0x48] sm:$0xf]
        %v551 = vld [vmem:[%s2] sm:$0xf]
        %553 = vset.pattern.permute.xlu0 0
        %554 = vperm.xlu0 %553, %v551
        %v555 = vpop.permute.xlu0 %554
        %vm557 = vcmask 293888
        %v559 = vsel %vm557, %v540, 0
        %v562 = vsel %vm309, %v549, 0
        %v565 = vsel %vm309, %v550, 0
        %567 = vmatpush.msra.mxu0 0.0
        %568 = vmatpush.msra.mxu0 0.0
        %569 = vmatpush.msra.mxu0 0.0
        %570 = vmatpush.msra.mxu0 0.0
        %571 = vmatpush.msra.mxu0 0.0
        %572 = vmatpush.msra.mxu0 0.0
        %573 = vmatpush.msra.mxu0 0.0
        %574 = vmatpush.msra.mxu0 0.0
        %575 = vmatpush.msra.mxu0 0.0
        %576 = vmatpush.msra.mxu0 0.0
        %577 = vmatpush.msra.mxu0 0.0
        %578 = vmatpush.msra.mxu0 %v562
        %579 = vmatpush.msra.mxu0 %v547
        %580 = vmatpush.msra.mxu0 %v545
        %581 = vmatpush.msra.mxu0 %v543
        %582 = vmatpush.msra.mxu0 %v541
        %583 = vmatmul.f32.gmra.mxu0 %v559
        %v584 = vpop.f32.mrf.mxu0
        %v585 = vadd.f32 %v555, %v584
        %586 = vdwg.mxu0
        %587 = vmatpush.msra.mxu0 0.0
        %588 = vmatpush.msra.mxu0 0.0
        %589 = vmatpush.msra.mxu0 0.0
        %590 = vmatpush.msra.mxu0 0.0
        %591 = vmatpush.msra.mxu0 0.0
        %592 = vmatpush.msra.mxu0 0.0
        %593 = vmatpush.msra.mxu0 0.0
        %594 = vmatpush.msra.mxu0 0.0
        %595 = vmatpush.msra.mxu0 0.0
        %596 = vmatpush.msra.mxu0 0.0
        %597 = vmatpush.msra.mxu0 0.0
        %598 = vmatpush.msra.mxu0 %v565
        %599 = vmatpush.msra.mxu0 %v548
        %600 = vmatpush.msra.mxu0 %v546
        %601 = vmatpush.msra.mxu0 %v544
        %602 = vmatpush.msra.mxu0 %v542
        %603 = vmatmul.f32.gmra.mxu0 %v559
        %v604 = vpop.f32.mrf.mxu0
        %v605 = vadd.f32 %v555, %v604
        %606 = vdwg.mxu0
        %v607 = vmax.f32 %v585, 0.0
        %v608 = vmax.f32 %v605, 0.0
        %v609 = vld [vmem:[#allocation6] ss:$8 sm:$0x3]
        %v611 = vperm.slane %v609, 0
        %v612 = vperm.slane %v609, 1
        %613 = vrot.lane.b32.xlu0 %v611, 111
        %v614 = vpop.permute.xlu0 %613
        %615 = vrot.lane.b32.xlu0 %v612, 111
        %v616 = vpop.permute.xlu0 %615
        %v617 = vsel %vm314, %v614, %v616
        %v620 = vmul.f32 %v607, %v617
        %v621 = vmul.f32 %v608, %v616
        %624 = vrot.lane.b32.xlu0 %v620, 17
        %v625 = vpop.permute.xlu0 %624
        %626 = vrot.lane.b32.xlu0 %v621, 17
        %v627 = vpop.permute.xlu0 %626
        %v628 = vsel %vm326, %v625, %v627
        %631 = vst.msk [vmem:[#allocation2] sm:$0xf] %vm330, %v625
        %632 = vst [vmem:[#allocation2 + $0x8] sm:$0xf] %v628
        %v633 = vld [vmem:[%s333] ss:$8 sm:$0x3]
        %v635 = vperm.slane %v633, 0
        %v636 = vperm.slane %v633, 1
        %637 = vrot.lane.b32.xlu0 %v635, 112
        %v638 = vpop.permute.xlu0 %637
        %639 = vrot.lane.b32.xlu0 %v636, 112
        %v640 = vpop.permute.xlu0 %639
        %v641 = vsel %vm343, %v638, %v640
        %v644 = vmul.f32 %v607, %v641
        %v645 = vmul.f32 %v608, %v640
        %v648 = vrot.slane %v644, 4
        %v649 = vrot.slane %v645, 4
        %650 = vrot.lane.b32.xlu0 %v648, 16
        %v651 = vpop.permute.xlu0 %650
        %652 = vrot.lane.b32.xlu0 %v649, 16
        %v653 = vpop.permute.xlu0 %652
        %v654 = vsel %vm356, %v651, %v653
        %657 = vst.msk [vmem:[#allocation2] sm:$0xf0] %vm360, %v651
        %658 = vst [vmem:[#allocation2 + $0x8] sm:$0xf0] %v654
        %v659 = vld [vmem:[%s363] ss:$8 sm:$0x3]
        %v661 = vperm.slane %v659, 0
        %v662 = vperm.slane %v659, 1
        %663 = vrot.lane.b32.xlu0 %v661, 113
        %v664 = vpop.permute.xlu0 %663
        %665 = vrot.lane.b32.xlu0 %v662, 113
        %v666 = vpop.permute.xlu0 %665
        %v667 = vsel %vm373, %v664, %v666
        %v670 = vmul.f32 %v607, %v667
        %v671 = vmul.f32 %v608, %v666
        %674 = vrot.lane.b32.xlu0 %v670, 15
        %v675 = vpop.permute.xlu0 %674
        %676 = vrot.lane.b32.xlu0 %v671, 15
        %v677 = vpop.permute.xlu0 %676
        %v678 = vsel %vm385, %v675, %v677
        %681 = vst.msk [vmem:[#allocation2 + $0x10] sm:$0xf] %vm389, %v675
        %682 = vst [vmem:[#allocation2 + $0x18] sm:$0xf] %v678
        %v683 = vld [vmem:[%s392] ss:$8 sm:$0x3]
        %v685 = vperm.slane %v683, 0
        %v686 = vperm.slane %v683, 1
        %687 = vrot.lane.b32.xlu0 %v685, 127
        %v688 = vpop.permute.xlu0 %687
        %689 = vrot.lane.b32.xlu0 %v686, 127
        %v690 = vpop.permute.xlu0 %689
        %v691 = vsel %vm402, %v688, %v690
        %v694 = vmul.f32 %v607, %v691
        %v695 = vmul.f32 %v608, %v690
        %v698 = vrot.slane %v694, 4
        %v699 = vrot.slane %v695, 4
        %700 = vrot.lane.b32.xlu0 %v698, 1
        %v701 = vpop.permute.xlu0 %700
        %702 = vrot.lane.b32.xlu0 %v699, 1
        %v703 = vpop.permute.xlu0 %702
        %v704 = vsel %vm415, %v701, %v703
        %707 = vst.msk [vmem:[#allocation2 + $0x10] sm:$0xf0] %vm419, %v701
        %708 = vst [vmem:[#allocation2 + $0x18] sm:$0xf0] %v704
        %709 = vst [vmem:[#allocation2 + $0x20] sm:$0xf] %v607
        %710 = vst [vmem:[#allocation2 + $0x28] sm:$0xf] %v608
        %v711 = vld [vmem:[%s430] ss:$8 sm:$0x3]
        %v713 = vperm.slane %v711, 0
        %v714 = vperm.slane %v711, 1
        %715 = vrot.lane.b32.xlu0 %v713, 1
        %v716 = vpop.permute.xlu0 %715
        %717 = vrot.lane.b32.xlu0 %v714, 1
        %v718 = vpop.permute.xlu0 %717
        %v719 = vsel %vm415, %v716, %v718
        %v722 = vmul.f32 %v607, %v716
        %v723 = vmul.f32 %v608, %v719
        %v726 = vrot.slane %v722, 4
        %v727 = vrot.slane %v723, 4
        %728 = vrot.lane.b32.xlu0 %v726, 127
        %v729 = vpop.permute.xlu0 %728
        %730 = vrot.lane.b32.xlu0 %v727, 127
        %v731 = vpop.permute.xlu0 %730
        %v732 = vsel %vm402, %v729, %v731
        %735 = vst [vmem:[#allocation2 + $0x20] sm:$0xf0] %v732
        %736 = vst.msk [vmem:[#allocation2 + $0x28] sm:$0xf0] %vm456, %v731
        %v737 = vld [vmem:[%s458] ss:$8 sm:$0x3]
        %v739 = vperm.slane %v737, 0
        %v740 = vperm.slane %v737, 1
        %741 = vrot.lane.b32.xlu0 %v739, 15
        %v742 = vpop.permute.xlu0 %741
        %743 = vrot.lane.b32.xlu0 %v740, 15
        %v744 = vpop.permute.xlu0 %743
        %v745 = vsel %vm385, %v742, %v744
        %v748 = vmul.f32 %v607, %v742
        %v749 = vmul.f32 %v608, %v745
        %752 = vrot.lane.b32.xlu0 %v748, 113
        %v753 = vpop.permute.xlu0 %752
        %754 = vrot.lane.b32.xlu0 %v749, 113
        %v755 = vpop.permute.xlu0 %754
        %v756 = vsel %vm373, %v753, %v755
        %759 = vst [vmem:[#allocation2 + $0x30] sm:$0xf] %v756
        %760 = vst.msk [vmem:[#allocation2 + $0x38] sm:$0xf] %vm483, %v755
        %v761 = vld [vmem:[%s485] ss:$8 sm:$0x3]
        %v763 = vperm.slane %v761, 0
        %v764 = vperm.slane %v761, 1
        %765 = vrot.lane.b32.xlu0 %v763, 16
        %v766 = vpop.permute.xlu0 %765
        %767 = vrot.lane.b32.xlu0 %v764, 16
        %v768 = vpop.permute.xlu0 %767
        %v769 = vsel %vm356, %v766, %v768
        %v772 = vmul.f32 %v607, %v766
        %v773 = vmul.f32 %v608, %v769
        %v776 = vrot.slane %v772, 4
        %v777 = vrot.slane %v773, 4
        %778 = vrot.lane.b32.xlu0 %v776, 112
        %v779 = vpop.permute.xlu0 %778
        %780 = vrot.lane.b32.xlu0 %v777, 112
        %v781 = vpop.permute.xlu0 %780
        %v782 = vsel %vm343, %v779, %v781
        %785 = vst [vmem:[#allocation2 + $0x30] sm:$0xf0] %v782
        %786 = vst.msk [vmem:[#allocation2 + $0x38] sm:$0xf0] %vm511, %v781
        %v787 = vld [vmem:[%s513] ss:$8 sm:$0x3]
        %v789 = vperm.slane %v787, 0
        %v790 = vperm.slane %v787, 1
        %791 = vrot.lane.b32.xlu0 %v789, 17
        %v792 = vpop.permute.xlu0 %791
        %793 = vrot.lane.b32.xlu0 %v790, 17
        %v794 = vpop.permute.xlu0 %793
        %v795 = vsel %vm326, %v792, %v794
        %v798 = vmul.f32 %v607, %v792
        %v799 = vmul.f32 %v608, %v795
        %802 = vrot.lane.b32.xlu0 %v798, 111
        %v803 = vpop.permute.xlu0 %802
        %804 = vrot.lane.b32.xlu0 %v799, 111
        %v805 = vpop.permute.xlu0 %804
        %v806 = vsel %vm314, %v803, %v805
        %809 = vst [vmem:[#allocation2 + $0x40] sm:$0xf] %v806
        %810 = vst.msk [vmem:[#allocation2 + $0x48] sm:$0xf] %vm538, %v805
        %v811 = vld [vmem:[%s3] sm:$0xf]
        %v812 = vld [vmem:[#allocation2] sm:$0xff]
        %v813 = vld [vmem:[#allocation2 + $0x8] sm:$0xff]
        %v814 = vld [vmem:[#allocation2 + $0x10] sm:$0xff]
        %v815 = vld [vmem:[#allocation2 + $0x18] sm:$0xff]
        %v816 = vld [vmem:[#allocation2 + $0x20] sm:$0xff]
        %v817 = vld [vmem:[#allocation2 + $0x28] sm:$0xff]
        %v818 = vld [vmem:[#allocation2 + $0x30] sm:$0xff]
        %v819 = vld [vmem:[#allocation2 + $0x38] sm:$0xff]
        %v820 = vld [vmem:[#allocation2 + $0x40] sm:$0xf]
        %v821 = vld [vmem:[#allocation2 + $0x48] sm:$0xf]
        %v822 = vld [vmem:[%s4] sm:$0xf]
        %824 = vset.pattern.permute.xlu0 0
        %825 = vperm.xlu0 %824, %v822
        %v826 = vpop.permute.xlu0 %825
        %v829 = vsel %vm557, %v811, 0
        %v832 = vsel %vm309, %v820, 0
        %v835 = vsel %vm309, %v821, 0
        %837 = vmatpush.msra.mxu0 0.0
        %838 = vmatpush.msra.mxu0 0.0
        %839 = vmatpush.msra.mxu0 0.0
        %840 = vmatpush.msra.mxu0 0.0
        %841 = vmatpush.msra.mxu0 0.0
        %842 = vmatpush.msra.mxu0 0.0
        %843 = vmatpush.msra.mxu0 0.0
        %844 = vmatpush.msra.mxu0 0.0
        %845 = vmatpush.msra.mxu0 0.0
        %846 = vmatpush.msra.mxu0 0.0
        %847 = vmatpush.msra.mxu0 0.0
        %848 = vmatpush.msra.mxu0 %v832
        %849 = vmatpush.msra.mxu0 %v818
        %850 = vmatpush.msra.mxu0 %v816
        %851 = vmatpush.msra.mxu0 %v814
        %852 = vmatpush.msra.mxu0 %v812
        %853 = vmatmul.f32.gmra.mxu0 %v829
        %v854 = vpop.f32.mrf.mxu0
        %v855 = vadd.f32 %v826, %v854
        %856 = vdwg.mxu0
        %857 = vmatpush.msra.mxu0 0.0
        %858 = vmatpush.msra.mxu0 0.0
        %859 = vmatpush.msra.mxu0 0.0
        %860 = vmatpush.msra.mxu0 0.0
        %861 = vmatpush.msra.mxu0 0.0
        %862 = vmatpush.msra.mxu0 0.0
        %863 = vmatpush.msra.mxu0 0.0
        %864 = vmatpush.msra.mxu0 0.0
        %865 = vmatpush.msra.mxu0 0.0
        %866 = vmatpush.msra.mxu0 0.0
        %867 = vmatpush.msra.mxu0 0.0
        %868 = vmatpush.msra.mxu0 %v835
        %869 = vmatpush.msra.mxu0 %v819
        %870 = vmatpush.msra.mxu0 %v817
        %871 = vmatpush.msra.mxu0 %v815
        %872 = vmatpush.msra.mxu0 %v813
        %873 = vmatmul.f32.gmra.mxu0 %v829
        %v874 = vpop.f32.mrf.mxu0
        %v875 = vadd.f32 %v826, %v874
        %876 = vdwg.mxu0
        %v879 = vrot.slane %v875, 4
        %v880 = vsel %vm309, %v855, %v879
        %v882 = vadd.f32 %v303, %v880
        %883 = vst [vmem:[%s286] sm:$0xff] %v882
        %s884 = sand.u32 %s163, 1
        %s885 = scalar_lea.sflag [#allocation5], %s884
        %s886 = sand.u32 %s163, 1
        %s887 = smul.addr %s886, 8
        %s888 = scalar_lea.vmem [#allocation8], %s887
        // Predicated region
        $region53: #{tpu_custom_call.1} parent=43 // pred_check
          %p889 = pneg %p173
        $region54: #{tpu_custom_call.1} parent=43 // pred_check_branch
          %891 = sbr.rel (%p889) target = $region56
        $region55: #{tpu_custom_call.1} parent=43 // pred_region
          %893 = vsyncadd %s885, 0
          %s894 = smul.addr %s24, 2
          %s895 = smul.addr %s894, 4
          %s896 = scalar_lea.hbm %s6, %s895
          %s898 = sshll.u32 %s888, 4
          %s899 = int_to_ptr.vmem [resolvable:$true] %s898
          %s900 = sshll.u32 %s896, 4
          %s901 = int_to_ptr.hbm [resolvable:$true] %s900
          %903 = dma.vmem_to_hbm [thread:$0]  %s899, 128, %s901, %s885
        $region56: #{tpu_custom_call.1} parent=43 // pred_fallthru
          _
      $region44: #{tpu_custom_call.1} parent=5 // pred_fallthru
        _
      %p904 = scmp.le.s32.totalorder 2, %s19
      // Predicated region
      $region57: #{tpu_custom_call.1} parent=5 // pred_check
        %p905 = pneg %p904
      $region58: #{tpu_custom_call.1} parent=5 // pred_check_branch
        %907 = sbr.rel (%p905) target = $region60
      $region59: #{tpu_custom_call.1} parent=5 // pred_region
        %s908 = ssub.s32 %s19, 2
        // Predicated region
        $region61: #{tpu_custom_call.1} parent=59 // pred_check
          %p909 = pneg %p179
        $region62: #{tpu_custom_call.1} parent=59 // pred_check_branch
          %911 = sbr.rel (%p909) target = $region64
        $region63: #{tpu_custom_call.1} parent=59 // pred_region
          %s912 = sand.u32 %s164, 1
          %s913 = scalar_lea.sflag [#allocation5], %s912
          %s914 = sand.u32 %s164, 1
          %s915 = smul.addr %s914, 8
          %s916 = scalar_lea.vmem [#allocation8], %s915
          %918 = dma.done %s913, 128
        $region64: #{tpu_custom_call.1} parent=59 // pred_fallthru
          _
      $region60: #{tpu_custom_call.1} parent=5 // pred_fallthru
        _
    $region6: #{tpu_custom_call.1} parent=1 // loop_footer
      %s23 = sadd.s32 1, %s19
    $region7: #{tpu_custom_call.1} parent=1 // loop_footer_branch
      %18 = sbr.rel target = $region3
    $region8: #{tpu_custom_call.1} parent=1 // loop_exit
      _
    %919 = vsyncpa [#allocation4], 1
    %s920 = scalar_lea.sflag [#allocation4], 1
    %921 = vsyncpa %s920, 1
    %922 = vsyncpa [#allocation7], 1
    %923 = vsyncpa [#allocation5], 1
    %s924 = scalar_lea.sflag [#allocation5], 1
    %925 = vsyncpa %s924, 1

</llo_original>
